<compile_context>
chip_gen: v7x
topology: tpu7x:2x2x1
jax: 0.10.0
libtpu: 0.0.40
codegen_flags: <defaults>
</compile_context>

<pallas_src>
import jax
import jax.numpy as jnp
from jax.experimental import pallas as pl
from jax.experimental.pallas import tpu as pltpu

EPS = 1e-5

# Conservative VMEM budget for the double-buffered blocks: fits the scoped
# default on v6e/v7x (32 MiB) and is explicitly requested on v5e (default 16).
_VMEM_BUDGET_BYTES = 24 * 1024 * 1024
_VMEM_LIMIT_BYTES = 32 * 1024 * 1024


def _bn_add_relu_kernel(x_ref, res_ref, gamma_ref, beta_ref, o_ref):
    # x_ref, res_ref, o_ref: (N, TC, HW); gamma_ref, beta_ref: (1, TC, 1)
    x = x_ref[...].astype(jnp.float32)
    n_elems = x.shape[0] * x.shape[2]
    inv_n = 1.0 / n_elems  # compile-time constant

    # Per-channel batch statistics (reduce over batch + spatial axes).
    mean = jnp.sum(x, axis=(0, 2), keepdims=True) * inv_n        # (1, TC, 1)
    d = x - mean
    var = jnp.sum(d * d, axis=(0, 2), keepdims=True) * inv_n     # biased var

    inv_std = jax.lax.rsqrt(var + EPS)                           # EUP
    scale = gamma_ref[...].astype(jnp.float32) * inv_std         # (1, TC, 1)

    y = d * scale + beta_ref[...].astype(jnp.float32) \
        + res_ref[...].astype(jnp.float32)                       # BN + residual
    o_ref[...] = jnp.maximum(y, 0.0).astype(o_ref.dtype)         # ReLU


def _block_bytes(tc, n, hw):
    # 3 big (N, TC, HW) f32 operands (x, res, out), double-buffered by Pallas.
    return 2 * 3 * n * tc * hw * 4


def _pick_channel_tile(C, N, HW):
    """Largest channel tile that fits VMEM; prefer >= 4 grid steps (v7x)."""
    cands = [t for t in (512, 256, 128, 64, 32, 16, 8) if C % t == 0]
    if not cands:
        return C  # irregular / tiny channel count: one block over full C

    fitting = [t for t in cands if _block_bytes(t, N, HW) <= _VMEM_BUDGET_BYTES]
    if not fitting:
        # TODO(synk): even TC=8 with the full N*H*W extent exceeds the VMEM
        # budget; an L-tiled two-pass (stats pass + apply pass) variant would
        # be needed for such shapes.
        fitting = [cands[-1]]

    # Prefer >= 4 grid steps (two per TensorCore on v7x + pipelining), then
    # >= 2, then whatever fits; within a target take the largest tile.
    for min_grid in (4, 2, 1):
        ok = [t for t in fitting if C // t >= min_grid]
        if ok:
            return ok[0]
    return fitting[0]


def bn_add_relu(x239, x232, gamma, beta):
    """x239, x232: (N, C, H, W); gamma, beta: (C,). Returns relu(BN(x239)+x232)."""
    N, C, H, W = x239.shape
    HW = H * W
    TC = _pick_channel_tile(C, N, HW)

    # Pure reshapes only — no transposes, no extra HBM round-trips.
    x3 = x239.reshape(N, C, HW)
    r3 = x232.reshape(N, C, HW)
    g3 = gamma.reshape(1, C, 1).astype(jnp.float32)
    b3 = beta.reshape(1, C, 1).astype(jnp.float32)

    grid = (pl.cdiv(C, TC),)

    out3 = pl.pallas_call(
        _bn_add_relu_kernel,
        out_shape=jax.ShapeDtypeStruct((N, C, HW), x239.dtype),
        grid=grid,
        in_specs=[
            pl.BlockSpec((N, TC, HW), lambda i: (0, i, 0)),
            pl.BlockSpec((N, TC, HW), lambda i: (0, i, 0)),
            pl.BlockSpec((1, TC, 1), lambda i: (0, i, 0)),
            pl.BlockSpec((1, TC, 1), lambda i: (0, i, 0)),
        ],
        out_specs=pl.BlockSpec((N, TC, HW), lambda i: (0, i, 0)),
        compiler_params=pltpu.CompilerParams(
            dimension_semantics=("parallel",),
            vmem_limit_bytes=_VMEM_LIMIT_BYTES,
        ),
        cost_estimate=pl.CostEstimate(
            flops=8 * N * C * HW,
            transcendentals=C,
            bytes_accessed=12 * N * C * HW,
        ),
    )(x3, r3, g3, b3)

    # TODO(synk): running_mean / running_var EMA updates (training-mode BN side
    # state) are not produced; only the forward activation is returned.
    return out3.reshape(N, C, H, W)


def _reference(x239, x232, gamma, beta):
    mean = jnp.mean(x239, axis=(0, 2, 3), keepdims=True)
    var = jnp.mean((x239 - mean) ** 2, axis=(0, 2, 3), keepdims=True)
    y = (x239 - mean) / jnp.sqrt(var + EPS)
    y = y * gamma.reshape(1, -1, 1, 1) + beta.reshape(1, -1, 1, 1)
    return jnp.maximum(y + x232, 0.0)


def _run_case(key, N, C, H, W):
    k1, k2, k3, k4 = jax.random.split(key, 4)
    x239 = jax.random.normal(k1, (N, C, H, W), dtype=jnp.float32)
    x232 = jax.random.normal(k2, (N, C, H, W), dtype=jnp.float32)
    gamma = 1.0 + 0.1 * jax.random.normal(k3, (C,), dtype=jnp.float32)
    beta = 0.1 * jax.random.normal(k4, (C,), dtype=jnp.float32)

    out = jax.block_until_ready(bn_add_relu(x239, x232, gamma, beta))
    ref = _reference(x239, x232, gamma, beta)
    assert out.shape == (N, C, H, W)
    assert jnp.allclose(out, ref, atol=1e-4, rtol=1e-4), "mismatch vs reference"


if __name__ == "__main__":
    # Small shapes consistent with the module (original: [1, 1024, 28, 28]).
    key = jax.random.PRNGKey(0)
    k_a, k_b = jax.random.split(key)
    _run_case(k_a, N=2, C=8, H=16, W=16)    # exercises the N>1 reduction path
    _run_case(k_b, N=1, C=16, H=8, W=8)     # production-like N=1 path
    print("KERNEL_OK")
</pallas_src>

<mosaic_0001>
module attributes {stable_mosaic.version = 11 : i64} {
  func.func @_bn_add_relu_kernel(%arg0: i32, %arg1: memref<2x8x256xf32, #tpu.memory_space<vmem>>, %arg2: memref<2x8x256xf32, #tpu.memory_space<vmem>>, %arg3: memref<1x8x1xf32, #tpu.memory_space<vmem>>, %arg4: memref<1x8x1xf32, #tpu.memory_space<vmem>>, %arg5: memref<2x8x256xf32, #tpu.memory_space<vmem>>) attributes {dimension_semantics = [#tpu.dimension_semantics<parallel>], iteration_bounds = array<i64: 1>, scalar_prefetch = 0 : i64, scratch_operands = 0 : i64, tpu.core_type = #tpu.core_type<tc>, window_params = [{transform_indices = @transform_0, window_bounds = array<i64: 2, 8, 256>}, {transform_indices = @transform_1, window_bounds = array<i64: 2, 8, 256>}, {transform_indices = @transform_2, window_bounds = array<i64: 1, 8, 1>}, {transform_indices = @transform_3, window_bounds = array<i64: 1, 8, 1>}, {transform_indices = @transform_4, window_bounds = array<i64: 2, 8, 256>}]} {
    %c0 = arith.constant 0 : index
    %c0_0 = arith.constant 0 : index
    %c0_1 = arith.constant 0 : index
    %0 = vector.load %arg1[%c0, %c0_0, %c0_1] : memref<2x8x256xf32, #tpu.memory_space<vmem>>, vector<2x8x256xf32>
    %cst = arith.constant dense<0.000000e+00> : vector<8xf32>
    %1 = vector.multi_reduction <add>, %0, %cst [0, 2] : vector<2x8x256xf32> to vector<8xf32>
    %2 = vector.shape_cast %1 : vector<8xf32> to vector<1x8x1xf32>
    %cst_2 = arith.constant 0.001953125 : f32
    %3 = vector.broadcast %cst_2 : f32 to vector<1x8x1xf32>
    %4 = arith.mulf %2, %3 : vector<1x8x1xf32>
    %5 = vector.broadcast %4 : vector<1x8x1xf32> to vector<2x8x256xf32>
    %6 = arith.subf %0, %5 : vector<2x8x256xf32>
    %7 = arith.mulf %6, %6 : vector<2x8x256xf32>
    %cst_3 = arith.constant dense<0.000000e+00> : vector<8xf32>
    %8 = vector.multi_reduction <add>, %7, %cst_3 [0, 2] : vector<2x8x256xf32> to vector<8xf32>
    %9 = vector.shape_cast %8 : vector<8xf32> to vector<1x8x1xf32>
    %cst_4 = arith.constant 0.001953125 : f32
    %10 = vector.broadcast %cst_4 : f32 to vector<1x8x1xf32>
    %11 = arith.mulf %9, %10 : vector<1x8x1xf32>
    %cst_5 = arith.constant 9.99999974E-6 : f32
    %12 = vector.broadcast %cst_5 : f32 to vector<1x8x1xf32>
    %13 = arith.addf %11, %12 : vector<1x8x1xf32>
    %14 = math.rsqrt %13 : vector<1x8x1xf32>
    %c0_6 = arith.constant 0 : index
    %c0_7 = arith.constant 0 : index
    %c0_8 = arith.constant 0 : index
    %15 = vector.load %arg3[%c0_6, %c0_7, %c0_8] : memref<1x8x1xf32, #tpu.memory_space<vmem>>, vector<1x8x1xf32>
    %16 = arith.mulf %15, %14 : vector<1x8x1xf32>
    %17 = vector.broadcast %16 : vector<1x8x1xf32> to vector<2x8x256xf32>
    %18 = arith.mulf %6, %17 : vector<2x8x256xf32>
    %c0_9 = arith.constant 0 : index
    %c0_10 = arith.constant 0 : index
    %c0_11 = arith.constant 0 : index
    %19 = vector.load %arg4[%c0_9, %c0_10, %c0_11] : memref<1x8x1xf32, #tpu.memory_space<vmem>>, vector<1x8x1xf32>
    %20 = vector.broadcast %19 : vector<1x8x1xf32> to vector<2x8x256xf32>
    %21 = arith.addf %18, %20 : vector<2x8x256xf32>
    %c0_12 = arith.constant 0 : index
    %c0_13 = arith.constant 0 : index
    %c0_14 = arith.constant 0 : index
    %22 = vector.load %arg2[%c0_12, %c0_13, %c0_14] : memref<2x8x256xf32, #tpu.memory_space<vmem>>, vector<2x8x256xf32>
    %23 = arith.addf %21, %22 : vector<2x8x256xf32>
    %cst_15 = arith.constant 0.000000e+00 : f32
    %24 = vector.broadcast %cst_15 : f32 to vector<2x8x256xf32>
    %25 = arith.maximumf %23, %24 : vector<2x8x256xf32>
    %c0_16 = arith.constant 0 : index
    %c0_17 = arith.constant 0 : index
    %c0_18 = arith.constant 0 : index
    %26 = vector.load %arg5[%c0_16, %c0_17, %c0_18] : memref<2x8x256xf32, #tpu.memory_space<vmem>>, vector<2x8x256xf32>
    tpu.vector_store %arg5[%c0_16, %c0_17, %c0_18], %25 {strides = array<i32>} : memref<2x8x256xf32, #tpu.memory_space<vmem>>, vector<2x8x256xf32>,
    return
  }
  func.func @transform_0(%arg0: i32) -> (i32, i32, i32) {
    %c0_i32 = arith.constant 0 : i32
    %c0_i32_0 = arith.constant 0 : i32
    %c0_i32_1 = arith.constant 0 : i32
    return %c0_i32, %arg0, %c0_i32_0 : i32, i32, i32
  }
  func.func @transform_1(%arg0: i32) -> (i32, i32, i32) {
    %c0_i32 = arith.constant 0 : i32
    %c0_i32_0 = arith.constant 0 : i32
    %c0_i32_1 = arith.constant 0 : i32
    return %c0_i32, %arg0, %c0_i32_0 : i32, i32, i32
  }
  func.func @transform_2(%arg0: i32) -> (i32, i32, i32) {
    %c0_i32 = arith.constant 0 : i32
    %c0_i32_0 = arith.constant 0 : i32
    %c0_i32_1 = arith.constant 0 : i32
    return %c0_i32, %arg0, %c0_i32_0 : i32, i32, i32
  }
  func.func @transform_3(%arg0: i32) -> (i32, i32, i32) {
    %c0_i32 = arith.constant 0 : i32
    %c0_i32_0 = arith.constant 0 : i32
    %c0_i32_1 = arith.constant 0 : i32
    return %c0_i32, %arg0, %c0_i32_0 : i32, i32, i32
  }
  func.func @transform_4(%arg0: i32) -> (i32, i32, i32) {
    %c0_i32 = arith.constant 0 : i32
    %c0_i32_0 = arith.constant 0 : i32
    %c0_i32_1 = arith.constant 0 : i32
    return %c0_i32, %arg0, %c0_i32_0 : i32, i32, i32
  }
}

</mosaic_0001>

<llo_original>
// kernel: tpu_custom_call.1
$region0: #{tpu_custom_call.1}
  #allocation0 [shape = 'u32[]', space=smem, size = 0x4, offset = 0x4, fixed_abs, tag = 'smem constant byte address 0x4 - core index']
  #allocation1 [shape = 'u32[144,128]{1,0:T(1,128)}', space=vmem, size = 0x12000, scoped, tag = 'internal scratch']
  %s0 = inlined_call_operand.hbm [shape: f32[2,8,256], index: 0, kind: input, shape index: {}]
  %s1 = inlined_call_operand.hbm [shape: f32[2,8,256], index: 1, kind: input, shape index: {}]
  %s2 = inlined_call_operand.vmem [shape: f32[1,8,1], index: 2, kind: input, shape index: {}]
  %s3 = inlined_call_operand.vmem [shape: f32[1,8,1], index: 3, kind: input, shape index: {}]
  %s4 = inlined_call_operand.hbm [shape: f32[2,8,256], index: 4, kind: output, shape index: {}]
  %s5 = sld [smem:[#allocation0]]
  $region34: #{tpu_custom_call.1} parent=0
    _
  %s7 = ssub.s32 1, %s5
  %s8 = scalar_select 0, %s7, %s5
  $region1: #{tpu_custom_call.1} parent=0
    #allocation2 [shape = 'u8[16384]{0}', space=vmem, size = 0x4000, scoped, tag = 'input window, operand 0, single buffered']
    #allocation3 [shape = 's32[1]{0}', space=sflag, size = 0x4, scoped, tag = 'scoped memory for tpu_custom_call.1']
    #allocation4 [shape = 's32[1]{0}', space=sflag, size = 0x4, scoped, tag = 'scoped memory for tpu_custom_call.1']
    #allocation5 [shape = 'u8[16384]{0}', space=vmem, size = 0x4000, scoped, tag = 'input window, operand 1, single buffered']
    #allocation6 [shape = 's32[1]{0}', space=sflag, size = 0x4, scoped, tag = 'scoped memory for tpu_custom_call.1']
    #allocation7 [shape = 'u8[16384]{0}', space=vmem, size = 0x4000, scoped, tag = 'output window, operand 0, single buffered']
    %9 = vsyncpa [#allocation3], 0
    %10 = vsyncpa [#allocation6], 0
    %11 = vsyncpa [#allocation4], 0
    // Predicated region
    $region2: #{tpu_custom_call.1} parent=1 // pred_check
      _
    $region3: #{tpu_custom_call.1} parent=1 // pred_check_branch
      %13 = sbr.rel (0) target = $region5
    $region4: #{tpu_custom_call.1} parent=1 // pred_region
      %s15 = ssub.s32 512, 512
      %16 = vsyncadd [#allocation3], %s15
      %s17 = sshll.u32 [#allocation2], 4
      %s18 = int_to_ptr.vmem [resolvable:$true] %s17
      %23 = dma.hbm_to_vmem [thread:$0]  %s0, 512, %s18, [#allocation3], 256, 256, 16
    $region5: #{tpu_custom_call.1} parent=1 // pred_fallthru
      _
    // Predicated region
    $region6: #{tpu_custom_call.1} parent=1 // pred_check
      _
    $region7: #{tpu_custom_call.1} parent=1 // pred_check_branch
      %25 = sbr.rel (0) target = $region9
    $region8: #{tpu_custom_call.1} parent=1 // pred_region
      %s27 = ssub.s32 512, 512
      %28 = vsyncadd [#allocation6], %s27
      %s29 = sshll.u32 [#allocation5], 4
      %s30 = int_to_ptr.vmem [resolvable:$true] %s29
      %35 = dma.hbm_to_vmem [thread:$0]  %s1, 512, %s30, [#allocation6], 256, 256, 16
    $region9: #{tpu_custom_call.1} parent=1 // pred_fallthru
      _
    // Predicated region
    $region10: #{tpu_custom_call.1} parent=1 // pred_check
      _
    $region11: #{tpu_custom_call.1} parent=1 // pred_check_branch
      %37 = sbr.rel (0) target = $region13
    $region12: #{tpu_custom_call.1} parent=1 // pred_region
      _
    $region13: #{tpu_custom_call.1} parent=1 // pred_fallthru
      _
    // Predicated region
    $region14: #{tpu_custom_call.1} parent=1 // pred_check
      _
    $region15: #{tpu_custom_call.1} parent=1 // pred_check_branch
      %39 = sbr.rel (0) target = $region17
    $region16: #{tpu_custom_call.1} parent=1 // pred_region
      _
    $region17: #{tpu_custom_call.1} parent=1 // pred_fallthru
      _
    // Predicated region
    $region18: #{tpu_custom_call.1} parent=1 // pred_check
      _
    $region19: #{tpu_custom_call.1} parent=1 // pred_check_branch
      %41 = sbr.rel (0) target = $region21
    $region20: #{tpu_custom_call.1} parent=1 // pred_region
      %42 = dma.done [#allocation3], 512
    $region21: #{tpu_custom_call.1} parent=1 // pred_fallthru
      _
    // Predicated region
    $region22: #{tpu_custom_call.1} parent=1 // pred_check
      _
    $region23: #{tpu_custom_call.1} parent=1 // pred_check_branch
      %44 = sbr.rel (0) target = $region25
    $region24: #{tpu_custom_call.1} parent=1 // pred_region
      %45 = dma.done [#allocation6], 512
    $region25: #{tpu_custom_call.1} parent=1 // pred_fallthru
      _
    %v46 = vld [vmem:[#allocation2] sm:$0xff]
    %v47 = vld [vmem:[#allocation2 + $0x8] sm:$0xff]
    %v48 = vld [vmem:[#allocation2 + $0x10] sm:$0xff]
    %v49 = vld [vmem:[#allocation2 + $0x18] sm:$0xff]
    %v50 = vadd.f32 %v46, %v47
    %v51 = vadd.f32 %v50, %v48
    %v52 = vadd.f32 %v51, %v49
    %53 = vadd.xlane.f32.xlu0 %v52
    %v54 = vpop.xlane.xlu0 %53
    %v55 = vmul.f32 %v54, 0.001953125
    %v56 = vsub.f32 %v46, %v55
    %v57 = vsub.f32 %v47, %v55
    %v58 = vsub.f32 %v48, %v55
    %v59 = vsub.f32 %v49, %v55
    %v60 = vmul.f32 %v56, %v56
    %v61 = vmul.f32 %v57, %v57
    %v62 = vmul.f32 %v58, %v58
    %v63 = vmul.f32 %v59, %v59
    %v64 = vadd.f32 %v60, %v61
    %v65 = vadd.f32 %v64, %v62
    %v66 = vadd.f32 %v65, %v63
    %67 = vadd.xlane.f32.xlu0 %v66
    %v68 = vpop.xlane.xlu0 %67
    %v69 = vmul.f32 %v68, 0.001953125
    %v70 = vadd.f32 %v69, 1e-05
    %v71 = vrsqrt.pop %v70
    %v72 = vld [vmem:[%s2] sm:$0xff]
    %v73 = vmul.f32 %v72, %v71
    %75 = vset.pattern.permute.xlu0 0
    %76 = vperm.xlu0 %75, %v73
    %v77 = vpop.permute.xlu0 %76
    %v79 = vmul.f32 %v56, %v77
    %v80 = vmul.f32 %v57, %v77
    %v81 = vmul.f32 %v58, %v77
    %v82 = vmul.f32 %v59, %v77
    %v83 = vld [vmem:[%s3] sm:$0xff]
    %85 = vset.pattern.permute.xlu0 0
    %86 = vperm.xlu0 %85, %v83
    %v87 = vpop.permute.xlu0 %86
    %v89 = vadd.f32 %v79, %v87
    %v90 = vadd.f32 %v80, %v87
    %v91 = vadd.f32 %v81, %v87
    %v92 = vadd.f32 %v82, %v87
    %v93 = vld [vmem:[#allocation5] sm:$0xff]
    %v94 = vld [vmem:[#allocation5 + $0x8] sm:$0xff]
    %v95 = vld [vmem:[#allocation5 + $0x10] sm:$0xff]
    %v96 = vld [vmem:[#allocation5 + $0x18] sm:$0xff]
    %v97 = vadd.f32 %v89, %v93
    %v98 = vadd.f32 %v90, %v94
    %v99 = vadd.f32 %v91, %v95
    %v100 = vadd.f32 %v92, %v96
    %v101 = vmax.f32 %v97, 0.0
    %v102 = vmax.f32 %v98, 0.0
    %v103 = vmax.f32 %v99, 0.0
    %v104 = vmax.f32 %v100, 0.0
    %105 = vst [vmem:[#allocation7] sm:$0xff] %v101
    %106 = vst [vmem:[#allocation7 + $0x8] sm:$0xff] %v102
    %107 = vst [vmem:[#allocation7 + $0x10] sm:$0xff] %v103
    %108 = vst [vmem:[#allocation7 + $0x18] sm:$0xff] %v104
    // Predicated region
    $region26: #{tpu_custom_call.1} parent=1 // pred_check
      _
    $region27: #{tpu_custom_call.1} parent=1 // pred_check_branch
      %110 = sbr.rel (0) target = $region29
    $region28: #{tpu_custom_call.1} parent=1 // pred_region
      %s112 = ssub.s32 512, 512
      %113 = vsyncadd [#allocation4], %s112
      %s114 = sshll.u32 [#allocation7], 4
      %s115 = int_to_ptr.vmem [resolvable:$true] %s114
      %120 = dma.vmem_to_hbm [thread:$0]  %s115, 512, %s4, [#allocation4], 256, 256, 16
    $region29: #{tpu_custom_call.1} parent=1 // pred_fallthru
      _
    // Predicated region
    $region30: #{tpu_custom_call.1} parent=1 // pred_check
      _
    $region31: #{tpu_custom_call.1} parent=1 // pred_check_branch
      %122 = sbr.rel (0) target = $region33
    $region32: #{tpu_custom_call.1} parent=1 // pred_region
      %123 = dma.done [#allocation4], 512
    $region33: #{tpu_custom_call.1} parent=1 // pred_fallthru
      _
    %124 = vsyncpa [#allocation3], 1
    %125 = vsyncpa [#allocation6], 1
    %126 = vsyncpa [#allocation4], 1

</llo_original>
